<compile_context>
chip_gen: v7x
topology: tpu7x:2x2x1
jax: 0.10.0
libtpu: 0.0.40
codegen_flags: <defaults>
</compile_context>

<pallas_src>
import functools

import jax
import jax.numpy as jnp
from jax import lax
from jax.experimental import pallas as pl
from jax.experimental.pallas import tpu as pltpu

NEG_INF = float("-inf")


def _round_up(v, m):
    return (v + m - 1) // m * m


# --------------------------------------------------------------------------
# Kernel 1: router (Linear -> ReLU -> top-k mask -> masked softmax)
# --------------------------------------------------------------------------
def router_kernel(x_ref, wr_ref, br_ref, rw_ref, *, active_experts):
    T, E = rw_ref.shape
    x = x_ref[...]                                                  # (T, D)
    scores = jnp.maximum(
        jnp.dot(x, wr_ref[...], preferred_element_type=jnp.float32)
        + br_ref[...], 0.0)                                         # (T, E)
    iota = lax.broadcasted_iota(jnp.int32, (T, E), 1)
    # iterative top-k selection (first-occurrence tie-break, as torch.topk)
    mask = jnp.zeros_like(scores)
    for _ in range(active_experts):
        cur = jnp.where(mask > 0, NEG_INF, scores)
        m = jnp.max(cur, axis=-1, keepdims=True)
        first = jnp.min(jnp.where(cur == m, iota, E), axis=-1, keepdims=True)
        mask = jnp.where(iota == first, 1.0, mask)
    masked = jnp.where(mask == 0, NEG_INF, scores)
    row_max = jnp.max(masked, axis=-1, keepdims=True)
    exps = jnp.exp(masked - row_max)                                # -inf -> 0
    denom = jnp.sum(exps, axis=-1, keepdims=True)
    rw_ref[...] = exps * pl.reciprocal(denom)                       # zeros off-topk


# --------------------------------------------------------------------------
# Kernel 2: grouped expert FFN.  One expert per grid step; weights picked via
# the scalar-prefetched tile->expert table (used only by the index_maps).
# --------------------------------------------------------------------------
def expert_kernel(tile_expert_ref, x_ref, g_ref, w1_ref, b1_ref, w2_ref,
                  b2_ref, o_ref):
    del tile_expert_ref  # consumed by the BlockSpec index_maps only
    x = x_ref[...].astype(w1_ref.dtype)                             # (tm, D)
    h = jnp.maximum(
        jnp.dot(x, w1_ref[...], preferred_element_type=jnp.float32)
        + b1_ref[...], 0.0)                                         # (tm, H) f32
    h = h.astype(w2_ref.dtype)
    y = jnp.dot(h, w2_ref[...], preferred_element_type=jnp.float32) \
        + b2_ref[...]                                               # (tm, D) f32
    o_ref[...] = (g_ref[...] * y).astype(o_ref.dtype)               # gate applied here


# --------------------------------------------------------------------------
# Wrapper
# --------------------------------------------------------------------------
@functools.partial(jax.jit, static_argnames=("num_experts", "active_experts",
                                              "tile_tokens", "weight_dtype"))
def sparse_moe(x, params, *, num_experts, active_experts, tile_tokens=512,
               weight_dtype=jnp.bfloat16):
    B, S, D = x.shape
    N, E, K, H = B * S, num_experts, active_experts, 4 * D
    wr, br, w1, b1, w2, b2 = params

    x2 = x.reshape(N, D)

    # ----- stage 1: router weights (Pallas) --------------------------------
    rt = _round_up(min(tile_tokens, max(N, 8)), 8)
    n_pad = _round_up(N, rt)
    xr = jnp.pad(x2, ((0, n_pad - N), (0, 0))) if n_pad != N else x2
    rw = pl.pallas_call(
        functools.partial(router_kernel, active_experts=K),
        out_shape=jax.ShapeDtypeStruct((n_pad, E), jnp.float32),
        grid_spec=pltpu.PrefetchScalarGridSpec(
            num_scalar_prefetch=0,
            grid=(n_pad // rt,),
            in_specs=[pl.BlockSpec((rt, D), lambda i: (i, 0)),
                      pl.BlockSpec((D, E), lambda i: (0, 0)),
                      pl.BlockSpec((1, E), lambda i: (0, 0))],
            out_specs=pl.BlockSpec((rt, E), lambda i: (i, 0)),
        ),
        compiler_params=pltpu.CompilerParams(
            dimension_semantics=("parallel",)),
    )(xr, wr, br)[:N]                                               # (N, E)

    # ----- stage 2: group (token, expert) pairs by expert (XLA) ------------
    gate, expert_idx = lax.top_k(rw, K)                             # (N, K)
    e_flat = expert_idx.reshape(-1).astype(jnp.int32)               # (N*K,)
    t_flat = jnp.broadcast_to(jnp.arange(N, dtype=jnp.int32)[:, None],
                              (N, K)).reshape(-1)
    g_flat = gate.reshape(-1)

    order = jnp.argsort(e_flat)                                     # stable
    e_sort, t_sort, g_sort = e_flat[order], t_flat[order], g_flat[order]

    tm = _round_up(min(tile_tokens, max(N * K, 8)), 8)
    P = _round_up(N * K, tm) + E * tm        # static bound on padded rows
    n_tiles = P // tm                        # >= E + 1  (megacore-friendly)

    counts = jnp.bincount(e_sort, length=E).astype(jnp.int32)       # (E,)
    starts = jnp.concatenate([jnp.zeros((1,), jnp.int32),
                              jnp.cumsum(counts)[:-1].astype(jnp.int32)])
    padded_counts = ((counts + tm - 1) // tm) * tm
    padded_starts = jnp.concatenate(
        [jnp.zeros((1,), jnp.int32),
         jnp.cumsum(padded_counts)[:-1].astype(jnp.int32)])

    rank = jnp.arange(N * K, dtype=jnp.int32) - starts[e_sort]
    dest = padded_starts[e_sort] + rank                             # unique rows

    x_grp = jnp.zeros((P, D), x2.dtype).at[dest].set(x2[t_sort])
    g_grp = jnp.zeros((P, 1), jnp.float32).at[dest].set(g_sort[:, None])

    tile_expert = jnp.clip(
        jnp.searchsorted(padded_starts,
                         jnp.arange(n_tiles, dtype=jnp.int32) * tm,
                         side="right").astype(jnp.int32) - 1,
        0, E - 1)                                                   # (n_tiles,)

    # ----- stage 3: grouped expert FFN (Pallas) -----------------------------
    w1c = w1.astype(weight_dtype)
    w2c = w2.astype(weight_dtype)
    b1r = b1.reshape(E, 1, H).astype(jnp.float32)
    b2r = b2.reshape(E, 1, D).astype(jnp.float32)

    bw = jnp.dtype(weight_dtype).itemsize
    vmem_est = 2 * (tm * D * 4 + tm * 4 + D * H * bw + H * 4
                    + H * D * bw + D * 4 + tm * D * 4)
    vmem_limit = int(min(max(2 * vmem_est, 32 * 2**20), 64 * 2**20))

    y_grp = pl.pallas_call(
        expert_kernel,
        out_shape=jax.ShapeDtypeStruct((P, D), x.dtype),
        grid_spec=pltpu.PrefetchScalarGridSpec(
            num_scalar_prefetch=1,
            grid=(n_tiles,),
            in_specs=[
                pl.BlockSpec((tm, D), lambda t, te: (t, 0)),          # x_grp
                pl.BlockSpec((tm, 1), lambda t, te: (t, 0)),          # gates
                pl.BlockSpec((pl.Squeezed(), D, H),
                             lambda t, te: (te[t], 0, 0)),            # W1[e]
                pl.BlockSpec((pl.Squeezed(), 1, H),
                             lambda t, te: (te[t], 0, 0)),            # b1[e]
                pl.BlockSpec((pl.Squeezed(), H, D),
                             lambda t, te: (te[t], 0, 0)),            # W2[e]
                pl.BlockSpec((pl.Squeezed(), 1, D),
                             lambda t, te: (te[t], 0, 0)),            # b2[e]
            ],
            out_specs=pl.BlockSpec((tm, D), lambda t, te: (t, 0)),
        ),
        compiler_params=pltpu.CompilerParams(
            dimension_semantics=("parallel",),
            vmem_limit_bytes=vmem_limit),
    )(tile_expert, x_grp, g_grp, w1c, b1r, w2c, b2r)

    # ----- stage 4: scatter-add gated expert outputs back to token order ---
    out2 = jnp.zeros((N, D), x.dtype).at[t_sort].add(y_grp[dest])
    return out2.reshape(B, S, D)


# --------------------------------------------------------------------------
# Pure-JAX reference mirroring the PyTorch module
# --------------------------------------------------------------------------
def sparse_moe_ref(x, params, *, num_experts, active_experts):
    wr, br, w1, b1, w2, b2 = params
    scores = jax.nn.relu(x @ wr + br[0])                            # (B,S,E)
    _, idx = lax.top_k(scores, active_experts)
    mask = jnp.clip(jnp.sum(jax.nn.one_hot(idx, num_experts,
                                           dtype=scores.dtype), axis=-2),
                    0.0, 1.0)
    masked = jnp.where(mask == 0, NEG_INF, scores)
    rw = jax.nn.softmax(masked, axis=-1)
    out = jnp.zeros_like(x)
    for e in range(num_experts):
        h = jax.nn.relu(x @ w1[e] + b1[e])
        y = h @ w2[e] + b2[e]
        out = out + (rw[..., e:e + 1] * mask[..., e:e + 1]) * y
    return out


def init_params(key, embed_dim, num_experts):
    D, E, H = embed_dim, num_experts, 4 * embed_dim
    ks = jax.random.split(key, 6)
    scale = 0.1
    wr = jax.random.normal(ks[0], (D, E), jnp.float32) * scale
    br = jax.random.normal(ks[1], (1, E), jnp.float32) * scale
    w1 = jax.random.normal(ks[2], (E, D, H), jnp.float32) * scale
    b1 = jax.random.normal(ks[3], (E, H), jnp.float32) * scale
    w2 = jax.random.normal(ks[4], (E, H, D), jnp.float32) * scale
    b2 = jax.random.normal(ks[5], (E, D), jnp.float32) * scale
    return (wr, br, w1, b1, w2, b2)


if __name__ == "__main__":
    D, num_experts, active_experts = 32, 8, 2

    key = jax.random.PRNGKey(0)
    kx1, kx2, kp = jax.random.split(key, 3)
    params = init_params(kp, D, num_experts)

    # Case 1: bf16 expert weights (default fast path), f32 accumulation.
    x1 = jax.random.normal(kx1, (2, 8, D), jnp.float32)
    out1 = jax.block_until_ready(
        sparse_moe(x1, params, num_experts=num_experts,
                   active_experts=active_experts))
    ref1 = sparse_moe_ref(x1, params, num_experts=num_experts,
                          active_experts=active_experts)
    assert out1.shape == x1.shape
    assert jnp.allclose(out1, ref1, rtol=3e-2, atol=3e-2), "mismatch (bf16 c1)"

    # Case 2: ragged token count (padding path), f32 weights -> tight check.
    x2 = jax.random.normal(kx2, (3, 5, D), jnp.float32)
    out2 = jax.block_until_ready(
        sparse_moe(x2, params, num_experts=num_experts,
                   active_experts=active_experts, weight_dtype=jnp.float32))
    ref2 = sparse_moe_ref(x2, params, num_experts=num_experts,
                          active_experts=active_experts)
    assert out2.shape == x2.shape
    assert jnp.allclose(out2, ref2, rtol=1e-4, atol=1e-4), "mismatch (f32 c2)"

    # Case 2b: bf16 path on the ragged shape as well.
    out2b = jax.block_until_ready(
        sparse_moe(x2, params, num_experts=num_experts,
                   active_experts=active_experts))
    assert jnp.allclose(out2b, ref2, rtol=3e-2, atol=3e-2), "mismatch (bf16 c2)"

    print("KERNEL_OK")
</pallas_src>

<mosaic_0001>
module attributes {stable_mosaic.version = 11 : i64} {
  func.func private @main(%arg0: i32) attributes {dimension_semantics = [#tpu.dimension_semantics<core_parallel>], iteration_bounds = array<i64: 2>, tpu.core_type = #tpu.core_type<sc_scalar_subcore>, window_params = []} {
    return
  }
}

module attributes {stable_mosaic.version = 11 : i64} {
  func.func private @main(%arg0: i32) attributes {dimension_semantics = [#tpu.dimension_semantics<core_parallel>], iteration_bounds = array<i64: 2>, tpu.core_type = #tpu.core_type<sc_scalar_subcore>, window_params = []} {
    return
  }
}

module attributes {stable_mosaic.version = 11 : i64} {
  func.func @router_kernel(%arg0: i32, %arg1: memref<16x32xf32, #tpu.memory_space<vmem>>, %arg2: memref<32x8xf32, #tpu.memory_space<vmem>>, %arg3: memref<1x8xf32, #tpu.memory_space<vmem>>, %arg4: memref<16x8xf32, #tpu.memory_space<vmem>>) attributes {dimension_semantics = [#tpu.dimension_semantics<parallel>], iteration_bounds = array<i64: 1>, scalar_prefetch = 0 : i64, scratch_operands = 0 : i64, tpu.core_type = #tpu.core_type<tc>, window_params = [{transform_indices = @transform_0, window_bounds = array<i64: 16, 32>}, {pipeline_mode = #tpu.pipeline_mode<synchronous>, transform_indices = @transform_1, window_bounds = array<i64: 32, 8>}, {pipeline_mode = #tpu.pipeline_mode<synchronous>, transform_indices = @transform_2, window_bounds = array<i64: 1, 8>}, {transform_indices = @transform_3, window_bounds = array<i64: 16, 8>}]} {
    %c0 = arith.constant 0 : index
    %c0_0 = arith.constant 0 : index
    %0 = vector.load %arg1[%c0, %c0_0] : memref<16x32xf32, #tpu.memory_space<vmem>>, vector<16x32xf32>
    %c0_1 = arith.constant 0 : index
    %c0_2 = arith.constant 0 : index
    %1 = vector.load %arg2[%c0_1, %c0_2] : memref<32x8xf32, #tpu.memory_space<vmem>>, vector<32x8xf32>
    %cst = arith.constant dense<0.000000e+00> : vector<16x8xf32>
    %2 = tpu.matmul %0, %1, %cst {dimension_numbers = #tpu.dot_dimension_numbers<[1], [0], [0], [1], [0, 0, 1, 1], [], []>} : vector<16x32xf32>, vector<32x8xf32>, vector<16x8xf32> -> vector<16x8xf32>
    %c0_3 = arith.constant 0 : index
    %c0_4 = arith.constant 0 : index
    %3 = vector.load %arg3[%c0_3, %c0_4] : memref<1x8xf32, #tpu.memory_space<vmem>>, vector<1x8xf32>
    %4 = vector.broadcast %3 : vector<1x8xf32> to vector<16x8xf32>
    %5 = arith.addf %2, %4 : vector<16x8xf32>
    %cst_5 = arith.constant 0.000000e+00 : f32
    %6 = vector.broadcast %cst_5 : f32 to vector<16x8xf32>
    %7 = arith.maximumf %5, %6 : vector<16x8xf32>
    %8 = tpu.iota {dimensions = array<i32: 1>} : vector<16x8xi32>
    %cst_6 = arith.constant 0.000000e+00 : f32
    %9 = vector.broadcast %cst_6 : f32 to vector<16x8xf32>
    %cst_7 = arith.constant 0.000000e+00 : f32
    %10 = vector.broadcast %cst_7 : f32 to vector<16x8xf32>
    %11 = arith.cmpf ogt, %9, %10 : vector<16x8xf32>
    %cst_8 = arith.constant 0xFF800000 : f32
    %12 = vector.broadcast %cst_8 : f32 to vector<16x8xf32>
    %13 = arith.select %11, %12, %7 : vector<16x8xi1>, vector<16x8xf32>
    %cst_9 = arith.constant dense<0xFF800000> : vector<16xf32>
    %14 = vector.multi_reduction <maximumf>, %13, %cst_9 [1] : vector<16x8xf32> to vector<16xf32>
    %15 = vector.shape_cast %14 : vector<16xf32> to vector<16x1xf32>
    %16 = vector.broadcast %15 : vector<16x1xf32> to vector<16x8xf32>
    %17 = arith.cmpf oeq, %13, %16 : vector<16x8xf32>
    %c8_i32 = arith.constant 8 : i32
    %18 = vector.broadcast %c8_i32 : i32 to vector<16x8xi32>
    %19 = arith.select %17, %8, %18 : vector<16x8xi1>, vector<16x8xi32>
    %cst_10 = arith.constant dense<2147483647> : vector<16xi32>
    %20 = vector.multi_reduction <minsi>, %19, %cst_10 [1] : vector<16x8xi32> to vector<16xi32>
    %21 = vector.shape_cast %20 : vector<16xi32> to vector<16x1xi32>
    %22 = vector.broadcast %21 : vector<16x1xi32> to vector<16x8xi32>
    %23 = arith.cmpi eq, %8, %22 : vector<16x8xi32>
    %cst_11 = arith.constant 1.000000e+00 : f32
    %24 = vector.broadcast %cst_11 : f32 to vector<16x8xf32>
    %25 = arith.select %23, %24, %9 : vector<16x8xi1>, vector<16x8xf32>
    %cst_12 = arith.constant 0.000000e+00 : f32
    %26 = vector.broadcast %cst_12 : f32 to vector<16x8xf32>
    %27 = arith.cmpf ogt, %25, %26 : vector<16x8xf32>
    %cst_13 = arith.constant 0xFF800000 : f32
    %28 = vector.broadcast %cst_13 : f32 to vector<16x8xf32>
    %29 = arith.select %27, %28, %7 : vector<16x8xi1>, vector<16x8xf32>
    %cst_14 = arith.constant dense<0xFF800000> : vector<16xf32>
    %30 = vector.multi_reduction <maximumf>, %29, %cst_14 [1] : vector<16x8xf32> to vector<16xf32>
    %31 = vector.shape_cast %30 : vector<16xf32> to vector<16x1xf32>
    %32 = vector.broadcast %31 : vector<16x1xf32> to vector<16x8xf32>
    %33 = arith.cmpf oeq, %29, %32 : vector<16x8xf32>
    %c8_i32_15 = arith.constant 8 : i32
    %34 = vector.broadcast %c8_i32_15 : i32 to vector<16x8xi32>
    %35 = arith.select %33, %8, %34 : vector<16x8xi1>, vector<16x8xi32>
    %cst_16 = arith.constant dense<2147483647> : vector<16xi32>
    %36 = vector.multi_reduction <minsi>, %35, %cst_16 [1] : vector<16x8xi32> to vector<16xi32>
    %37 = vector.shape_cast %36 : vector<16xi32> to vector<16x1xi32>
    %38 = vector.broadcast %37 : vector<16x1xi32> to vector<16x8xi32>
    %39 = arith.cmpi eq, %8, %38 : vector<16x8xi32>
    %cst_17 = arith.constant 1.000000e+00 : f32
    %40 = vector.broadcast %cst_17 : f32 to vector<16x8xf32>
    %41 = arith.select %39, %40, %25 : vector<16x8xi1>, vector<16x8xf32>
    %cst_18 = arith.constant 0.000000e+00 : f32
    %42 = vector.broadcast %cst_18 : f32 to vector<16x8xf32>
    %43 = arith.cmpf oeq, %41, %42 : vector<16x8xf32>
    %cst_19 = arith.constant 0xFF800000 : f32
    %44 = vector.broadcast %cst_19 : f32 to vector<16x8xf32>
    %45 = arith.select %43, %44, %7 : vector<16x8xi1>, vector<16x8xf32>
    %cst_20 = arith.constant dense<0xFF800000> : vector<16xf32>
    %46 = vector.multi_reduction <maximumf>, %45, %cst_20 [1] : vector<16x8xf32> to vector<16xf32>
    %47 = vector.shape_cast %46 : vector<16xf32> to vector<16x1xf32>
    %48 = vector.broadcast %47 : vector<16x1xf32> to vector<16x8xf32>
    %49 = arith.subf %45, %48 : vector<16x8xf32>
    %50 = math.exp %49 : vector<16x8xf32>
    %cst_21 = arith.constant dense<0.000000e+00> : vector<16xf32>
    %51 = vector.multi_reduction <add>, %50, %cst_21 [1] : vector<16x8xf32> to vector<16xf32>
    %52 = vector.shape_cast %51 : vector<16xf32> to vector<16x1xf32>
    %53 = tpu.reciprocal %52 : vector<16x1xf32> -> vector<16x1xf32>
    %54 = vector.broadcast %53 : vector<16x1xf32> to vector<16x8xf32>
    %55 = arith.mulf %50, %54 : vector<16x8xf32>
    %c0_22 = arith.constant 0 : index
    %c0_23 = arith.constant 0 : index
    %56 = vector.load %arg4[%c0_22, %c0_23] : memref<16x8xf32, #tpu.memory_space<vmem>>, vector<16x8xf32>
    tpu.vector_store %arg4[%c0_22, %c0_23], %55 {strides = array<i32>} : memref<16x8xf32, #tpu.memory_space<vmem>>, vector<16x8xf32>,
    return
  }
  func.func @transform_0(%arg0: i32) -> (i32, i32) {
    %c0_i32 = arith.constant 0 : i32
    %c0_i32_0 = arith.constant 0 : i32
    return %arg0, %c0_i32 : i32, i32
  }
  func.func @transform_1(%arg0: i32) -> (i32, i32) {
    %c0_i32 = arith.constant 0 : i32
    %c0_i32_0 = arith.constant 0 : i32
    %c0_i32_1 = arith.constant 0 : i32
    return %c0_i32, %c0_i32_0 : i32, i32
  }
  func.func @transform_2(%arg0: i32) -> (i32, i32) {
    %c0_i32 = arith.constant 0 : i32
    %c0_i32_0 = arith.constant 0 : i32
    %c0_i32_1 = arith.constant 0 : i32
    return %c0_i32, %c0_i32_0 : i32, i32
  }
  func.func @transform_3(%arg0: i32) -> (i32, i32) {
    %c0_i32 = arith.constant 0 : i32
    %c0_i32_0 = arith.constant 0 : i32
    return %arg0, %c0_i32 : i32, i32
  }
}

module attributes {stable_mosaic.version = 11 : i64} {
  func.func @expert_kernel(%arg0: i32, %arg1: memref<9xi32, #tpu.memory_space<smem>>, %arg2: memref<32x32xf32, #tpu.memory_space<vmem>>, %arg3: memref<32x1xf32, #tpu.memory_space<vmem>>, %arg4: memref<1x32x128xbf16, #tpu.memory_space<vmem>>, %arg5: memref<1x1x128xf32, #tpu.memory_space<vmem>>, %arg6: memref<1x128x32xbf16, #tpu.memory_space<vmem>>, %arg7: memref<1x1x32xf32, #tpu.memory_space<vmem>>, %arg8: memref<32x32xf32, #tpu.memory_space<vmem>>) attributes {dimension_semantics = [#tpu.dimension_semantics<parallel>], iteration_bounds = array<i64: 9>, scalar_prefetch = 1 : i64, scratch_operands = 0 : i64, tpu.core_type = #tpu.core_type<tc>, window_params = [{transform_indices = @transform_0, window_bounds = array<i64: 32, 32>}, {transform_indices = @transform_1, window_bounds = array<i64: 32, 1>}, {transform_indices = @transform_2, window_bounds = array<i64: 1, 32, 128>}, {transform_indices = @transform_3, window_bounds = array<i64: 1, 1, 128>}, {transform_indices = @transform_4, window_bounds = array<i64: 1, 128, 32>}, {transform_indices = @transform_5, window_bounds = array<i64: 1, 1, 32>}, {transform_indices = @transform_6, window_bounds = array<i64: 32, 32>}]} {
    %c0 = arith.constant 0 : index
    %c0_0 = arith.constant 0 : index
    %0 = vector.load %arg2[%c0, %c0_0] : memref<32x32xf32, #tpu.memory_space<vmem>>, vector<32x32xf32>
    %1 = arith.truncf %0 : vector<32x32xf32> to vector<32x32xbf16>
    %c0_1 = arith.constant 0 : index
    %c0_2 = arith.constant 0 : index
    %c0_3 = arith.constant 0 : index
    %2 = vector.load %arg4[%c0_1, %c0_2, %c0_3] : memref<1x32x128xbf16, #tpu.memory_space<vmem>>, vector<1x32x128xbf16>
    %3 = vector.shape_cast %2 : vector<1x32x128xbf16> to vector<32x128xbf16>
    %cst = arith.constant dense<0.000000e+00> : vector<32x128xf32>
    %4 = tpu.matmul %1, %3, %cst {dimension_numbers = #tpu.dot_dimension_numbers<[1], [0], [0], [1], [0, 0, 1, 1], [], []>} : vector<32x32xbf16>, vector<32x128xbf16>, vector<32x128xf32> -> vector<32x128xf32>
    %c0_4 = arith.constant 0 : index
    %c0_5 = arith.constant 0 : index
    %c0_6 = arith.constant 0 : index
    %5 = vector.load %arg5[%c0_4, %c0_5, %c0_6] : memref<1x1x128xf32, #tpu.memory_space<vmem>>, vector<1x1x128xf32>
    %6 = vector.shape_cast %5 : vector<1x1x128xf32> to vector<1x128xf32>
    %7 = vector.broadcast %6 : vector<1x128xf32> to vector<32x128xf32>
    %8 = arith.addf %4, %7 : vector<32x128xf32>
    %cst_7 = arith.constant 0.000000e+00 : f32
    %9 = vector.broadcast %cst_7 : f32 to vector<32x128xf32>
    %10 = arith.maximumf %8, %9 : vector<32x128xf32>
    %11 = arith.truncf %10 : vector<32x128xf32> to vector<32x128xbf16>
    %c0_8 = arith.constant 0 : index
    %c0_9 = arith.constant 0 : index
    %c0_10 = arith.constant 0 : index
    %12 = vector.load %arg6[%c0_8, %c0_9, %c0_10] : memref<1x128x32xbf16, #tpu.memory_space<vmem>>, vector<1x128x32xbf16>
    %13 = vector.shape_cast %12 : vector<1x128x32xbf16> to vector<128x32xbf16>
    %cst_11 = arith.constant dense<0.000000e+00> : vector<32x32xf32>
    %14 = tpu.matmul %11, %13, %cst_11 {dimension_numbers = #tpu.dot_dimension_numbers<[1], [0], [0], [1], [0, 0, 1, 1], [], []>} : vector<32x128xbf16>, vector<128x32xbf16>, vector<32x32xf32> -> vector<32x32xf32>
    %c0_12 = arith.constant 0 : index
    %c0_13 = arith.constant 0 : index
    %c0_14 = arith.constant 0 : index
    %15 = vector.load %arg7[%c0_12, %c0_13, %c0_14] : memref<1x1x32xf32, #tpu.memory_space<vmem>>, vector<1x1x32xf32>
    %16 = vector.shape_cast %15 : vector<1x1x32xf32> to vector<1x32xf32>
    %17 = vector.broadcast %16 : vector<1x32xf32> to vector<32x32xf32>
    %18 = arith.addf %14, %17 : vector<32x32xf32>
    %c0_15 = arith.constant 0 : index
    %c0_16 = arith.constant 0 : index
    %19 = vector.load %arg3[%c0_15, %c0_16] : memref<32x1xf32, #tpu.memory_space<vmem>>, vector<32x1xf32>
    %20 = vector.broadcast %19 : vector<32x1xf32> to vector<32x32xf32>
    %21 = arith.mulf %20, %18 : vector<32x32xf32>
    %c0_17 = arith.constant 0 : index
    %c0_18 = arith.constant 0 : index
    %22 = vector.load %arg8[%c0_17, %c0_18] : memref<32x32xf32, #tpu.memory_space<vmem>>, vector<32x32xf32>
    tpu.vector_store %arg8[%c0_17, %c0_18], %21 {strides = array<i32>} : memref<32x32xf32, #tpu.memory_space<vmem>>, vector<32x32xf32>,
    return
  }
  func.func @transform_0(%arg0: i32, %arg1: memref<9xi32, #tpu.memory_space<smem>>) -> (i32, i32) {
    %c0_i32 = arith.constant 0 : i32
    %c0_i32_0 = arith.constant 0 : i32
    return %arg0, %c0_i32 : i32, i32
  }
  func.func @transform_1(%arg0: i32, %arg1: memref<9xi32, #tpu.memory_space<smem>>) -> (i32, i32) {
    %c0_i32 = arith.constant 0 : i32
    %c0_i32_0 = arith.constant 0 : i32
    return %arg0, %c0_i32 : i32, i32
  }
  func.func @transform_2(%arg0: i32, %arg1: memref<9xi32, #tpu.memory_space<smem>>) -> (i32, i32, i32) {
    %0 = arith.index_cast %arg0 : i32 to index
    %1 = memref.load %arg1[%0] : memref<9xi32, #tpu.memory_space<smem>>
    %c0_i32 = arith.constant 0 : i32
    %c0_i32_0 = arith.constant 0 : i32
    %c0_i32_1 = arith.constant 0 : i32
    return %1, %c0_i32, %c0_i32_0 : i32, i32, i32
  }
  func.func @transform_3(%arg0: i32, %arg1: memref<9xi32, #tpu.memory_space<smem>>) -> (i32, i32, i32) {
    %0 = arith.index_cast %arg0 : i32 to index
    %1 = memref.load %arg1[%0] : memref<9xi32, #tpu.memory_space<smem>>
    %c0_i32 = arith.constant 0 : i32
    %c0_i32_0 = arith.constant 0 : i32
    %c0_i32_1 = arith.constant 0 : i32
    return %1, %c0_i32, %c0_i32_0 : i32, i32, i32
  }
  func.func @transform_4(%arg0: i32, %arg1: memref<9xi32, #tpu.memory_space<smem>>) -> (i32, i32, i32) {
    %0 = arith.index_cast %arg0 : i32 to index
    %1 = memref.load %arg1[%0] : memref<9xi32, #tpu.memory_space<smem>>
    %c0_i32 = arith.constant 0 : i32
    %c0_i32_0 = arith.constant 0 : i32
    %c0_i32_1 = arith.constant 0 : i32
    return %1, %c0_i32, %c0_i32_0 : i32, i32, i32
  }
  func.func @transform_5(%arg0: i32, %arg1: memref<9xi32, #tpu.memory_space<smem>>) -> (i32, i32, i32) {
    %0 = arith.index_cast %arg0 : i32 to index
    %1 = memref.load %arg1[%0] : memref<9xi32, #tpu.memory_space<smem>>
    %c0_i32 = arith.constant 0 : i32
    %c0_i32_0 = arith.constant 0 : i32
    %c0_i32_1 = arith.constant 0 : i32
    return %1, %c0_i32, %c0_i32_0 : i32, i32, i32
  }
  func.func @transform_6(%arg0: i32, %arg1: memref<9xi32, #tpu.memory_space<smem>>) -> (i32, i32) {
    %c0_i32 = arith.constant 0 : i32
    %c0_i32_0 = arith.constant 0 : i32
    return %arg0, %c0_i32 : i32, i32
  }
}

</mosaic_0001>

<llo_original>
// kernel: custom-call
$region0: #{custom-call}
  %s0 = inlined_call_operand.vmem [shape: u32[9], index: 0, kind: output, shape index: {}]

// kernel: sparse_moe.2
$region0: #{sparse_moe.2}
  #allocation0 [shape = 'u32[]', space=smem, size = 0x4, offset = 0x4, fixed_abs, tag = 'smem constant byte address 0x4 - core index']
  #allocation1 [shape = 'u32[144,128]{1,0:T(1,128)}', space=vmem, size = 0x12000, scoped, tag = 'internal scratch']
  %s0 = inlined_call_operand.vmem [shape: f32[16,32], index: 0, kind: input, shape index: {}]
  %s1 = inlined_call_operand.vmem [shape: f32[32,8], index: 1, kind: input, shape index: {}]
  %s2 = inlined_call_operand.vmem [shape: f32[1,8], index: 2, kind: input, shape index: {}]
  %s3 = inlined_call_operand.vmem [shape: f32[16,8], index: 3, kind: output, shape index: {}]
  %s4 = sld [smem:[#allocation0]]
  $region22: #{sparse_moe.2} parent=0
    _
  %s6 = ssub.s32 1, %s4
  %s7 = scalar_select 0, %s6, %s4
  // Predicated region
  $region2: #{sparse_moe.2} parent=0 // pred_check
    _
  $region3: #{sparse_moe.2} parent=0 // pred_check_branch
    %9 = sbr.rel (0) target = $region5
  $region4: #{sparse_moe.2} parent=0 // pred_region
    _
  $region5: #{sparse_moe.2} parent=0 // pred_fallthru
    _
  // Predicated region
  $region6: #{sparse_moe.2} parent=0 // pred_check
    _
  $region7: #{sparse_moe.2} parent=0 // pred_check_branch
    %11 = sbr.rel (0) target = $region9
  $region8: #{sparse_moe.2} parent=0 // pred_region
    _
  $region9: #{sparse_moe.2} parent=0 // pred_fallthru
    _
  // Predicated region
  $region10: #{sparse_moe.2} parent=0 // pred_check
    _
  $region11: #{sparse_moe.2} parent=0 // pred_check_branch
    %13 = sbr.rel (0) target = $region13
  $region12: #{sparse_moe.2} parent=0 // pred_region
    _
  $region13: #{sparse_moe.2} parent=0 // pred_fallthru
    _
  %v14 = vld [vmem:[%s0] sm:$0xff]
  %v15 = vld [vmem:[%s0 + $0x8] sm:$0xff]
  %v16 = vld [vmem:[%s1] sm:$0xff]
  %v17 = vld [vmem:[%s1 + $0x8] sm:$0xff]
  %v18 = vld [vmem:[%s1 + $0x10] sm:$0xff]
  %v19 = vld [vmem:[%s1 + $0x18] sm:$0xff]
  %v20 = vld [vmem:[%s2] sm:$0x1]
  %v22 = vlaneseq
  %v23 = vshrl.u32 %v22, 7
  %v24 = vsub.s32 0, %v23
  %v25 = vrot.slane %v20, %v24
  %vm27 = vcmask 261120
  %v29 = vsel %vm27, %v14, 0
  %v32 = vsel %vm27, %v15, 0
  %34 = vmatprep.subr.mxu0 0.0
  %35 = vmatpush1.msra.mxu0 %v16
  %36 = vmatprep.subr.mxu0 0.0
  %37 = vmatpush1.msra.mxu0 %v17
  %38 = vmatprep.subr.mxu0 0.0
  %39 = vmatpush1.msra.mxu0 %v18
  %40 = vmatprep.subr.mxu0 0.0
  %41 = vmatpush1.msra.mxu0 %v19
  %42 = vmatprep.subr.mxu0 0.0
  %43 = vmatpush1.msra.mxu0 0.0
  %44 = vmatprep.subr.mxu0 0.0
  %45 = vmatpush1.msra.mxu0 0.0
  %46 = vmatprep.subr.mxu0 0.0
  %47 = vmatpush1.msra.mxu0 0.0
  %48 = vmatprep.subr.mxu0 0.0
  %49 = vmatpush1.msra.mxu0 0.0
  %50 = vmatprep.subr.mxu0 0.0
  %51 = vmatpush1.msra.mxu0 0.0
  %52 = vmatprep.subr.mxu0 0.0
  %53 = vmatpush1.msra.mxu0 0.0
  %54 = vmatprep.subr.mxu0 0.0
  %55 = vmatpush1.msra.mxu0 0.0
  %56 = vmatprep.subr.mxu0 0.0
  %57 = vmatpush1.msra.mxu0 0.0
  %58 = vmatprep.subr.mxu0 0.0
  %59 = vmatpush1.msra.mxu0 0.0
  %60 = vmatprep.subr.mxu0 0.0
  %61 = vmatpush1.msra.mxu0 0.0
  %62 = vmatprep.subr.mxu0 0.0
  %63 = vmatpush1.msra.mxu0 0.0
  %64 = vmatprep.subr.mxu0 0.0
  %65 = vmatpush1.msra.mxu0 0.0
  %66 = vmatprep.subr.mxu0 0.0
  %67 = vmatpush1.msra.mxu0 0.0
  %68 = vmatprep.subr.mxu0 0.0
  %69 = vmatpush1.msra.mxu0 0.0
  %70 = vmatprep.subr.mxu0 0.0
  %71 = vmatpush1.msra.mxu0 0.0
  %72 = vmatprep.subr.mxu0 0.0
  %73 = vmatpush1.msra.mxu0 0.0
  %74 = vmatprep.subr.mxu0 0.0
  %75 = vmatpush1.msra.mxu0 0.0
  %76 = vmatprep.subr.mxu0 0.0
  %77 = vmatpush1.msra.mxu0 0.0
  %78 = vmatprep.subr.mxu0 0.0
  %79 = vmatpush1.msra.mxu0 0.0
  %80 = vmatprep.subr.mxu0 0.0
  %81 = vmatpush1.msra.mxu0 0.0
  %82 = vmatprep.subr.mxu0 0.0
  %83 = vmatpush1.msra.mxu0 0.0
  %84 = vmatprep.subr.mxu0 0.0
  %85 = vmatpush1.msra.mxu0 0.0
  %86 = vmatprep.subr.mxu0 0.0
  %87 = vmatpush1.msra.mxu0 0.0
  %88 = vmatprep.subr.mxu0 0.0
  %89 = vmatpush1.msra.mxu0 0.0
  %90 = vmatprep.subr.mxu0 0.0
  %91 = vmatpush1.msra.mxu0 0.0
  %92 = vmatprep.subr.mxu0 0.0
  %93 = vmatpush1.msra.mxu0 0.0
  %94 = vmatprep.subr.mxu0 0.0
  %95 = vmatpush1.msra.mxu0 0.0
  %96 = vmatprep.subr.mxu0 0.0
  %97 = vmatpush1.msra.mxu0 0.0
  %98 = vmatprep.mubr.f32.mxu0 0.0
  %99 = vmatmul.mubr.f32.gmra.mrb[0].mxu0 %v29
  %v100 = vpop.f32.mrb[0].mxu0
  %v101 = vadd.f32 %v25, %v100
  %v102 = vpop.f32.mrb[0].mxu0
  %103 = vmatprep.mubr.f32.mxu0 0.0
  %104 = vmatmul.mubr.f32.gmra.mrb[0].mxu0 %v32
  %v105 = vpop.f32.mrb[0].mxu0
  %v106 = vadd.f32 %v25, %v105
  %v107 = vpop.f32.mrb[0].mxu0
  %108 = vdwg.mxu0
  %v109 = vmax.f32 %v101, 0.0
  %v110 = vmax.f32 %v106, 0.0
  %v111 = vlaneseq
  %v112 = vand.u32 %v111, 127
  %vm113 = vcmp.gt.f32.partialorder 0.0, 0.0
  %v114 = vsel %vm113, -inf, %v109
  %v115 = vsel %vm113, -inf, %v110
  %vm116 = vcmask 64512
  %v117 = vsel %vm116, %v114, -inf
  %118 = vmax.xlane.f32.xlu0 %v117
  %v119 = vpop.xlane.xlu0 %118
  %v120 = vsel %vm116, %v115, -inf
  %121 = vmax.xlane.f32.xlu0 %v120
  %v122 = vpop.xlane.xlu0 %121
  %vm123 = vcmp.eq.f32.partialorder %v114, %v119
  %vm124 = vcmp.eq.f32.partialorder %v115, %v122
  %v125 = vsel %vm123, %v112, 8
  %v126 = vsel %vm124, %v112, 8
  %v127 = vsel %vm116, %v125, 2147483647
  %v128 = vand.u32 %v127, 65535
  %v129 = vshra.s32 %v127, 16
  %v130 = vcvt.s32.f32 %v128
  %v131 = vcvt.s32.f32 %v129
  %132 = vmin.xlane.f32.xlu0 %v131
  %v133 = vpop.xlane.xlu0 %132
  %vm134 = vcmp.eq.f32.partialorder %v131, %v133
  %v135 = vsel %vm134, %v130, inf
  %136 = vmin.xlane.f32.xlu0 %v135
  %v137 = vpop.xlane.xlu0 %136
  %v138 = vcvt.f32.s32 %v137
  %v139 = vcvt.f32.s32 %v133
  %v140 = vshll.u32 %v139, 16
  %v141 = vadd.s32 %v140, %v138
  %v142 = vsel %vm116, %v126, 2147483647
  %v143 = vand.u32 %v142, 65535
  %v144 = vshra.s32 %v142, 16
  %v145 = vcvt.s32.f32 %v143
  %v146 = vcvt.s32.f32 %v144
  %147 = vmin.xlane.f32.xlu0 %v146
  %v148 = vpop.xlane.xlu0 %147
  %vm149 = vcmp.eq.f32.partialorder %v146, %v148
  %v150 = vsel %vm149, %v145, inf
  %151 = vmin.xlane.f32.xlu0 %v150
  %v152 = vpop.xlane.xlu0 %151
  %v153 = vcvt.f32.s32 %v152
  %v154 = vcvt.f32.s32 %v148
  %v155 = vshll.u32 %v154, 16
  %v156 = vadd.s32 %v155, %v153
  %vm157 = vcmp.eq.s32.totalorder %v112, %v141
  %vm158 = vcmp.eq.s32.totalorder %v112, %v156
  %v159 = vsel %vm157, 1.0, 0.0
  %v160 = vsel %vm158, 1.0, 0.0
  %vm161 = vcmp.gt.f32.partialorder %v159, 0.0
  %vm162 = vcmp.gt.f32.partialorder %v160, 0.0
  %v163 = vsel %vm161, -inf, %v109
  %v164 = vsel %vm162, -inf, %v110
  %v165 = vsel %vm116, %v163, -inf
  %166 = vmax.xlane.f32.xlu0 %v165
  %v167 = vpop.xlane.xlu0 %166
  %v168 = vsel %vm116, %v164, -inf
  %169 = vmax.xlane.f32.xlu0 %v168
  %v170 = vpop.xlane.xlu0 %169
  %vm171 = vcmp.eq.f32.partialorder %v163, %v167
  %vm172 = vcmp.eq.f32.partialorder %v164, %v170
  %v173 = vsel %vm171, %v112, 8
  %v174 = vsel %vm172, %v112, 8
  %v175 = vsel %vm116, %v173, 2147483647
  %v176 = vand.u32 %v175, 65535
  %v177 = vshra.s32 %v175, 16
  %v178 = vcvt.s32.f32 %v176
  %v179 = vcvt.s32.f32 %v177
  %180 = vmin.xlane.f32.xlu0 %v179
  %v181 = vpop.xlane.xlu0 %180
  %vm182 = vcmp.eq.f32.partialorder %v179, %v181
  %v183 = vsel %vm182, %v178, inf
  %184 = vmin.xlane.f32.xlu0 %v183
  %v185 = vpop.xlane.xlu0 %184
  %v186 = vcvt.f32.s32 %v185
  %v187 = vcvt.f32.s32 %v181
  %v188 = vshll.u32 %v187, 16
  %v189 = vadd.s32 %v188, %v186
  %v190 = vsel %vm116, %v174, 2147483647
  %v191 = vand.u32 %v190, 65535
  %v192 = vshra.s32 %v190, 16
  %v193 = vcvt.s32.f32 %v191
  %v194 = vcvt.s32.f32 %v192
  %195 = vmin.xlane.f32.xlu0 %v194
  %v196 = vpop.xlane.xlu0 %195
  %vm197 = vcmp.eq.f32.partialorder %v194, %v196
  %v198 = vsel %vm197, %v193, inf
  %199 = vmin.xlane.f32.xlu0 %v198
  %v200 = vpop.xlane.xlu0 %199
  %v201 = vcvt.f32.s32 %v200
  %v202 = vcvt.f32.s32 %v196
  %v203 = vshll.u32 %v202, 16
  %v204 = vadd.s32 %v203, %v201
  %vm205 = vcmp.eq.s32.totalorder %v112, %v189
  %vm206 = vcmp.eq.s32.totalorder %v112, %v204
  %v207 = vsel %vm205, 1.0, %v159
  %v208 = vsel %vm206, 1.0, %v160
  %vm209 = vcmp.eq.f32.partialorder %v207, 0.0
  %vm210 = vcmp.eq.f32.partialorder %v208, 0.0
  %v211 = vsel %vm209, -inf, %v109
  %v212 = vsel %vm210, -inf, %v110
  %v213 = vsel %vm116, %v211, -inf
  %214 = vmax.xlane.f32.xlu0 %v213
  %v215 = vpop.xlane.xlu0 %214
  %v216 = vsel %vm116, %v212, -inf
  %217 = vmax.xlane.f32.xlu0 %v216
  %v218 = vpop.xlane.xlu0 %217
  %v219 = vsub.f32 %v211, %v215
  %v220 = vsub.f32 %v212, %v218
  %v221 = vmul.f32 %v219, 1.442695
  %v222 = vpow.pop %v221
  %v223 = vmul.f32 %v220, 1.442695
  %v224 = vpow.pop %v223
  %v225 = vsel %vm116, %v222, 0.0
  %226 = vadd.xlane.f32.xlu0 %v225
  %v227 = vpop.xlane.xlu0 %226
  %v228 = vsel %vm116, %v224, 0.0
  %229 = vadd.xlane.f32.xlu0 %v228
  %v230 = vpop.xlane.xlu0 %229
  %v231 = vrcp.pop %v227
  %v232 = vrcp.pop %v230
  %v233 = vmul.f32 %v222, %v231
  %v234 = vmul.f32 %v224, %v232
  %235 = vst.msk [vmem:[%s3] sm:$0xff] %vm116, %v233
  %236 = vst.msk [vmem:[%s3 + $0x8] sm:$0xff] %vm116, %v234
  // Predicated region
  $region14: #{sparse_moe.2} parent=0 // pred_check
    _
  $region15: #{sparse_moe.2} parent=0 // pred_check_branch
    %238 = sbr.rel (0) target = $region17
  $region16: #{sparse_moe.2} parent=0 // pred_region
    _
  $region17: #{sparse_moe.2} parent=0 // pred_fallthru
    _
  // Predicated region
  $region18: #{sparse_moe.2} parent=0 // pred_check
    _
  $region19: #{sparse_moe.2} parent=0 // pred_check_branch
    %240 = sbr.rel (0) target = $region21
  $region20: #{sparse_moe.2} parent=0 // pred_region
    _
  $region21: #{sparse_moe.2} parent=0 // pred_fallthru
    _

// kernel: sparse_moe.3
$region0: #{sparse_moe.3}
  #allocation0 [shape = 'u32[]', space=smem, size = 0x4, offset = 0x4, fixed_abs, tag = 'smem constant byte address 0x4 - core index']
  #allocation1 [shape = 'u32[144,128]{1,0:T(1,128)}', space=vmem, size = 0x12000, scoped, tag = 'internal scratch']
  #allocation2 [shape = 's32[1]{0}', space=sflag, size = 0x4, scoped, tag = 'scoped memory for sparse_moe.3']
  #allocation3 [shape = 'u8[512]{0}', space=smem, size = 0x200, scoped, tag = 'prefetched SMEM operand 0']
  %s0 = inlined_call_operand.vmem [shape: s32[9], index: 0, kind: input, shape index: {}]
  %s1 = inlined_call_operand.vmem [shape: f32[288,32], index: 1, kind: input, shape index: {}]
  %s2 = inlined_call_operand.vmem [shape: f32[288,1], index: 2, kind: input, shape index: {}]
  %s3 = inlined_call_operand.vmem [shape: bf16[8,32,128], index: 3, kind: input, shape index: {}]
  %s4 = inlined_call_operand.vmem [shape: f32[8,1,128], index: 4, kind: input, shape index: {}]
  %s5 = inlined_call_operand.vmem [shape: bf16[8,128,32], index: 5, kind: input, shape index: {}]
  %s6 = inlined_call_operand.vmem [shape: f32[8,1,32], index: 6, kind: input, shape index: {}]
  %s7 = inlined_call_operand.vmem [shape: f32[288,32], index: 7, kind: output, shape index: {}]
  %s8 = sld [smem:[#allocation0]]
  $region57: #{sparse_moe.3} parent=0
    _
  %s10 = ssub.s32 1, %s8
  %s11 = scalar_select 0, %s10, %s8
  %s12 = sshll.u32 %s0, 4
  %s13 = int_to_ptr.vmem [resolvable:$true] %s12
  %15 = dma.vmem_to_smem %s13, 16, [#allocation3], [#allocation2]
  %16 = dma.done [#allocation2], 16
  %17 = sfence
  loop: start=0, step=1, limit=11
  $region2: #{sparse_moe.3} parent=0 // loop_pre_header
    _
  $region3: #{sparse_moe.3} parent=0 // loop_header
    %s19 = sphi 0, %s23
    %p20 = scmp.ge.s32.totalorder %s19, 11
    %s29 = sphi 0, %s31
    %s32 = sphi 0, %s29
    %s33 = sphi 0, %s32
    %s49 = sphi 0, %s33
    %s55 = sphi 0, %s57
    %s58 = sphi 0, %s55
    %s59 = sphi 0, %s58
    %s75 = sphi 0, %s59
    %s83 = sphi 0, %s85
    %s86 = sphi 0, %s83
    %s87 = sphi 0, %s86
    %s103 = sphi 0, %s87
    %s111 = sphi 0, %s113
    %s114 = sphi 0, %s111
    %s115 = sphi 0, %s114
    %s131 = sphi 0, %s115
    %s139 = sphi 0, %s141
    %s142 = sphi 0, %s139
    %s143 = sphi 0, %s142
    %s159 = sphi 0, %s143
    %s167 = sphi 0, %s169
    %s170 = sphi 0, %s167
    %s171 = sphi 0, %s170
    %s187 = sphi 0, %s171
    %s193 = sphi 0, %s195
    %s196 = sphi 0, %s193
    %s197 = sphi 0, %s196
    %s213 = sphi 0, %s197
  $region4: #{sparse_moe.3} parent=0 // loop_header_branch
    %22 = sbr.rel (%p20) target = $region8
  $region5: #{sparse_moe.3} parent=0 // loop_body
    %s24 = ssub.s32 %s19, 1
    %s25 = ssub.s32 %s19, 2
    %s26 = sadd.s32 %s19, 1
    %s27 = ssub.s32 %s19, %s26
    %p28 = scmp.eq.s32.totalorder %s27, 0
    %s30 = sadd.s32 %s29, 1
    %s31 = scalar_select %p28, %s29, %s30
    %p34 = pneg %p28
    %p35 = scmp.eq.s32.totalorder %s19, 8
    %p36 = por %p34, %p35
    %p37 = scmp.ne.s32.totalorder %s29, %s32
    %p38 = scmp.eq.s32.totalorder %s19, 0
    %p39 = por %p37, %p38
    %p40 = scmp.ne.s32.totalorder %s29, %s32
    %p41 = scmp.eq.s32.totalorder %s24, 8
    %p42 = por %p40, %p41
    %p43 = scmp.ne.s32.totalorder %s32, %s33
    %p44 = scmp.eq.s32.totalorder %s24, 0
    %p45 = por %p43, %p44
    %p46 = scmp.ne.s32.totalorder %s32, %s33
    %p47 = scmp.eq.s32.totalorder %s25, 8
    %p48 = por %p46, %p47
    %p50 = scmp.ne.s32.totalorder %s33, %s49
    %p51 = scmp.eq.s32.totalorder %s25, 0
    %p52 = por %p50, %p51
    %s53 = ssub.s32 %s19, %s26
    %p54 = scmp.eq.s32.totalorder %s53, 0
    %s56 = sadd.s32 %s55, 1
    %s57 = scalar_select %p54, %s55, %s56
    %p60 = pneg %p54
    %p61 = scmp.eq.s32.totalorder %s19, 8
    %p62 = por %p60, %p61
    %p63 = scmp.ne.s32.totalorder %s55, %s58
    %p64 = scmp.eq.s32.totalorder %s19, 0
    %p65 = por %p63, %p64
    %p66 = scmp.ne.s32.totalorder %s55, %s58
    %p67 = scmp.eq.s32.totalorder %s24, 8
    %p68 = por %p66, %p67
    %p69 = scmp.ne.s32.totalorder %s58, %s59
    %p70 = scmp.eq.s32.totalorder %s24, 0
    %p71 = por %p69, %p70
    %p72 = scmp.ne.s32.totalorder %s58, %s59
    %p73 = scmp.eq.s32.totalorder %s25, 8
    %p74 = por %p72, %p73
    %p76 = scmp.ne.s32.totalorder %s59, %s75
    %p77 = scmp.eq.s32.totalorder %s25, 0
    %p78 = por %p76, %p77
    %s79 = sld [smem:[#allocation3 + %s19]]
    %s80 = sld [smem:[#allocation3 + %s26]]
    %s81 = ssub.s32 %s79, %s80
    %p82 = scmp.eq.s32.totalorder %s81, 0
    %s84 = sadd.s32 %s83, 1
    %s85 = scalar_select %p82, %s83, %s84
    %p88 = pneg %p82
    %p89 = scmp.eq.s32.totalorder %s19, 8
    %p90 = por %p88, %p89
    %p91 = scmp.ne.s32.totalorder %s83, %s86
    %p92 = scmp.eq.s32.totalorder %s19, 0
    %p93 = por %p91, %p92
    %p94 = scmp.ne.s32.totalorder %s83, %s86
    %p95 = scmp.eq.s32.totalorder %s24, 8
    %p96 = por %p94, %p95
    %p97 = scmp.ne.s32.totalorder %s86, %s87
    %p98 = scmp.eq.s32.totalorder %s24, 0
    %p99 = por %p97, %p98
    %p100 = scmp.ne.s32.totalorder %s86, %s87
    %p101 = scmp.eq.s32.totalorder %s25, 8
    %p102 = por %p100, %p101
    %p104 = scmp.ne.s32.totalorder %s87, %s103
    %p105 = scmp.eq.s32.totalorder %s25, 0
    %p106 = por %p104, %p105
    %s107 = sld [smem:[#allocation3 + %s19]]
    %s108 = sld [smem:[#allocation3 + %s26]]
    %s109 = ssub.s32 %s107, %s108
    %p110 = scmp.eq.s32.totalorder %s109, 0
    %s112 = sadd.s32 %s111, 1
    %s113 = scalar_select %p110, %s111, %s112
    %p116 = pneg %p110
    %p117 = scmp.eq.s32.totalorder %s19, 8
    %p118 = por %p116, %p117
    %p119 = scmp.ne.s32.totalorder %s111, %s114
    %p120 = scmp.eq.s32.totalorder %s19, 0
    %p121 = por %p119, %p120
    %p122 = scmp.ne.s32.totalorder %s111, %s114
    %p123 = scmp.eq.s32.totalorder %s24, 8
    %p124 = por %p122, %p123
    %p125 = scmp.ne.s32.totalorder %s114, %s115
    %p126 = scmp.eq.s32.totalorder %s24, 0
    %p127 = por %p125, %p126
    %p128 = scmp.ne.s32.totalorder %s114, %s115
    %p129 = scmp.eq.s32.totalorder %s25, 8
    %p130 = por %p128, %p129
    %p132 = scmp.ne.s32.totalorder %s115, %s131
    %p133 = scmp.eq.s32.totalorder %s25, 0
    %p134 = por %p132, %p133
    %s135 = sld [smem:[#allocation3 + %s19]]
    %s136 = sld [smem:[#allocation3 + %s26]]
    %s137 = ssub.s32 %s135, %s136
    %p138 = scmp.eq.s32.totalorder %s137, 0
    %s140 = sadd.s32 %s139, 1
    %s141 = scalar_select %p138, %s139, %s140
    %p144 = pneg %p138
    %p145 = scmp.eq.s32.totalorder %s19, 8
    %p146 = por %p144, %p145
    %p147 = scmp.ne.s32.totalorder %s139, %s142
    %p148 = scmp.eq.s32.totalorder %s19, 0
    %p149 = por %p147, %p148
    %p150 = scmp.ne.s32.totalorder %s139, %s142
    %p151 = scmp.eq.s32.totalorder %s24, 8
    %p152 = por %p150, %p151
    %p153 = scmp.ne.s32.totalorder %s142, %s143
    %p154 = scmp.eq.s32.totalorder %s24, 0
    %p155 = por %p153, %p154
    %p156 = scmp.ne.s32.totalorder %s142, %s143
    %p157 = scmp.eq.s32.totalorder %s25, 8
    %p158 = por %p156, %p157
    %p160 = scmp.ne.s32.totalorder %s143, %s159
    %p161 = scmp.eq.s32.totalorder %s25, 0
    %p162 = por %p160, %p161
    %s163 = sld [smem:[#allocation3 + %s19]]
    %s164 = sld [smem:[#allocation3 + %s26]]
    %s165 = ssub.s32 %s163, %s164
    %p166 = scmp.eq.s32.totalorder %s165, 0
    %s168 = sadd.s32 %s167, 1
    %s169 = scalar_select %p166, %s167, %s168
    %p172 = pneg %p166
    %p173 = scmp.eq.s32.totalorder %s19, 8
    %p174 = por %p172, %p173
    %p175 = scmp.ne.s32.totalorder %s167, %s170
    %p176 = scmp.eq.s32.totalorder %s19, 0
    %p177 = por %p175, %p176
    %p178 = scmp.ne.s32.totalorder %s167, %s170
    %p179 = scmp.eq.s32.totalorder %s24, 8
    %p180 = por %p178, %p179
    %p181 = scmp.ne.s32.totalorder %s170, %s171
    %p182 = scmp.eq.s32.totalorder %s24, 0
    %p183 = por %p181, %p182
    %p184 = scmp.ne.s32.totalorder %s170, %s171
    %p185 = scmp.eq.s32.totalorder %s25, 8
    %p186 = por %p184, %p185
    %p188 = scmp.ne.s32.totalorder %s171, %s187
    %p189 = scmp.eq.s32.totalorder %s25, 0
    %p190 = por %p188, %p189
    %s191 = ssub.s32 %s19, %s26
    %p192 = scmp.eq.s32.totalorder %s191, 0
    %s194 = sadd.s32 %s193, 1
    %s195 = scalar_select %p192, %s193, %s194
    %p198 = pneg %p192
    %p199 = scmp.eq.s32.totalorder %s19, 8
    %p200 = por %p198, %p199
    %p201 = scmp.ne.s32.totalorder %s193, %s196
    %p202 = scmp.eq.s32.totalorder %s19, 0
    %p203 = por %p201, %p202
    %p204 = scmp.ne.s32.totalorder %s193, %s196
    %p205 = scmp.eq.s32.totalorder %s24, 8
    %p206 = por %p204, %p205
    %p207 = scmp.ne.s32.totalorder %s196, %s197
    %p208 = scmp.eq.s32.totalorder %s24, 0
    %p209 = por %p207, %p208
    %p210 = scmp.ne.s32.totalorder %s196, %s197
    %p211 = scmp.eq.s32.totalorder %s25, 8
    %p212 = por %p210, %p211
    %p214 = scmp.ne.s32.totalorder %s197, %s213
    %p215 = scmp.eq.s32.totalorder %s25, 0
    %p216 = por %p214, %p215
    %p217 = scmp.le.s32.totalorder 1, %s19
    %p218 = scmp.lt.s32.totalorder %s19, 10
    %p219 = pnand %p217, %p218
    %p220 = pneg %p219
    // Predicated region
    $region9: #{sparse_moe.3} parent=5 // pred_check
      _
    $region10: #{sparse_moe.3} parent=5 // pred_check_branch
      %222 = sbr.rel (%p219) target = $region12
    $region11: #{sparse_moe.3} parent=5 // pred_region
      %s223 = ssub.s32 %s19, 1
    $region12: #{sparse_moe.3} parent=5 // pred_fallthru
      _
    %p224 = scmp.lt.s32.totalorder %s19, 9
    // Predicated region
    $region13: #{sparse_moe.3} parent=5 // pred_check
      %p225 = pneg %p224
    $region14: #{sparse_moe.3} parent=5 // pred_check_branch
      %227 = sbr.rel (%p225) target = $region16
    $region15: #{sparse_moe.3} parent=5 // pred_region
      // Predicated region
      $region17: #{sparse_moe.3} parent=15 // pred_check
        %p228 = pneg %p39
      $region18: #{sparse_moe.3} parent=15 // pred_check_branch
        %230 = sbr.rel (%p228) target = $region20
      $region19: #{sparse_moe.3} parent=15 // pred_region
        %s231 = smul.u32 4, %s19
        %p232 = scmp.lt.s32.totalorder %s231, 35
        %s233 = scalar_select %p232, %s231, 35
        %s234 = smul.addr %s233, 8
        %s235 = scalar_lea.vmem %s1, %s234
        %s236 = smul.u32 4, %s19
      $region20: #{sparse_moe.3} parent=15 // pred_fallthru
        _
      // Predicated region
      $region21: #{sparse_moe.3} parent=15 // pred_check
        %p237 = pneg %p65
      $region22: #{sparse_moe.3} parent=15 // pred_check_branch
        %239 = sbr.rel (%p237) target = $region24
      $region23: #{sparse_moe.3} parent=15 // pred_region
        %s240 = smul.u32 4, %s19
        %p241 = scmp.lt.s32.totalorder %s240, 35
        %s242 = scalar_select %p241, %s240, 35
        %s243 = smul.addr %s242, 8
        %s244 = scalar_lea.vmem %s2, %s243
        %s245 = smul.u32 4, %s19
      $region24: #{sparse_moe.3} parent=15 // pred_fallthru
        _
      // Predicated region
      $region25: #{sparse_moe.3} parent=15 // pred_check
        %p246 = pneg %p93
      $region26: #{sparse_moe.3} parent=15 // pred_check_branch
        %248 = sbr.rel (%p246) target = $region28
      $region27: #{sparse_moe.3} parent=15 // pred_region
        %s249 = sld [smem:[#allocation3 + %s19]]
        %p250 = scmp.lt.s32.totalorder %s249, 7
        %s251 = scalar_select %p250, %s249, 7
        %s252 = smul.addr %s251, 4
        %s253 = smul.addr %s252, 4
        %s254 = scalar_lea.vmem %s3, %s253
        %s255 = sld [smem:[#allocation3 + %s19]]
      $region28: #{sparse_moe.3} parent=15 // pred_fallthru
        _
      // Predicated region
      $region29: #{sparse_moe.3} parent=15 // pred_check
        %p256 = pneg %p121
      $region30: #{sparse_moe.3} parent=15 // pred_check_branch
        %258 = sbr.rel (%p256) target = $region32
      $region31: #{sparse_moe.3} parent=15 // pred_region
        %s259 = sld [smem:[#allocation3 + %s19]]
        %p260 = scmp.lt.s32.totalorder %s259, 7
        %s261 = scalar_select %p260, %s259, 7
        %s262 = scalar_lea.vmem %s4, %s261
        %s263 = sld [smem:[#allocation3 + %s19]]
      $region32: #{sparse_moe.3} parent=15 // pred_fallthru
        _
      // Predicated region
      $region33: #{sparse_moe.3} parent=15 // pred_check
        %p264 = pneg %p149
      $region34: #{sparse_moe.3} parent=15 // pred_check_branch
        %266 = sbr.rel (%p264) target = $region36
      $region35: #{sparse_moe.3} parent=15 // pred_region
        %s267 = sld [smem:[#allocation3 + %s19]]
        %p268 = scmp.lt.s32.totalorder %s267, 7
        %s269 = scalar_select %p268, %s267, 7
        %s270 = smul.addr %s269, 16
        %s271 = smul.addr %s270, 4
        %s272 = scalar_lea.vmem %s5, %s271
        %s273 = sld [smem:[#allocation3 + %s19]]
      $region36: #{sparse_moe.3} parent=15 // pred_fallthru
        _
      // Predicated region
      $region37: #{sparse_moe.3} parent=15 // pred_check
        %p274 = pneg %p177
      $region38: #{sparse_moe.3} parent=15 // pred_check_branch
        %276 = sbr.rel (%p274) target = $region40
      $region39: #{sparse_moe.3} parent=15 // pred_region
        %s277 = sld [smem:[#allocation3 + %s19]]
        %p278 = scmp.lt.s32.totalorder %s277, 7
        %s279 = scalar_select %p278, %s277, 7
        %s280 = scalar_lea.vmem %s6, %s279
        %s281 = sld [smem:[#allocation3 + %s19]]
      $region40: #{sparse_moe.3} parent=15 // pred_fallthru
        _
    $region16: #{sparse_moe.3} parent=5 // pred_fallthru
      _
    %p282 = scmp.le.s32.totalorder 1, %s19
    %p283 = scmp.lt.s32.totalorder %s19, 10
    %p284 = pnand %p282, %p283
    %p285 = pneg %p284
    // Predicated region
    $region41: #{sparse_moe.3} parent=5 // pred_check
      _
    $region42: #{sparse_moe.3} parent=5 // pred_check_branch
      %287 = sbr.rel (%p284) target = $region44
    $region43: #{sparse_moe.3} parent=5 // pred_region
      %s288 = ssub.s32 %s19, 1
      %s289 = smul.u32 4, %s24
      %p290 = scmp.lt.s32.totalorder %s289, 35
      %s291 = scalar_select %p290, %s289, 35
      %s292 = smul.addr %s291, 8
      %s293 = scalar_lea.vmem %s1, %s292
      %p294 = pneg %p45
      %p295 = pneg %p42
      %s296 = smul.u32 4, %s24
      %p297 = scmp.lt.s32.totalorder %s296, 35
      %s298 = scalar_select %p297, %s296, 35
      %s299 = smul.addr %s298, 8
      %s300 = scalar_lea.vmem %s2, %s299
      %p301 = pneg %p71
      %p302 = pneg %p68
      %s303 = sld [smem:[#allocation3 + %s24]]
      %p304 = scmp.lt.s32.totalorder %s303, 7
      %s305 = scalar_select %p304, %s303, 7
      %s306 = smul.addr %s305, 4
      %s307 = smul.addr %s306, 4
      %s308 = scalar_lea.vmem %s3, %s307
      %p309 = pneg %p99
      %p310 = pneg %p96
      %s311 = sld [smem:[#allocation3 + %s24]]
      %p312 = scmp.lt.s32.totalorder %s311, 7
      %s313 = scalar_select %p312, %s311, 7
      %s314 = scalar_lea.vmem %s4, %s313
      %p315 = pneg %p127
      %p316 = pneg %p124
      %s317 = sld [smem:[#allocation3 + %s24]]
      %p318 = scmp.lt.s32.totalorder %s317, 7
      %s319 = scalar_select %p318, %s317, 7
      %s320 = smul.addr %s319, 16
      %s321 = smul.addr %s320, 4
      %s322 = scalar_lea.vmem %s5, %s321
      %p323 = pneg %p155
      %p324 = pneg %p152
      %s325 = sld [smem:[#allocation3 + %s24]]
      %p326 = scmp.lt.s32.totalorder %s325, 7
      %s327 = scalar_select %p326, %s325, 7
      %s328 = scalar_lea.vmem %s6, %s327
      %p329 = pneg %p183
      %p330 = pneg %p180
      %p331 = pneg %p209
      %p332 = pneg %p206
      %s333 = smul.u32 4, %s24
      %p334 = scmp.lt.s32.totalorder %s333, 35
      %s335 = scalar_select %p334, %s333, 35
      %s336 = smul.addr %s335, 8
      %s337 = scalar_lea.vmem %s7, %s336
      %s338 = smul.u32 4, %s24
      %p339 = scmp.lt.s32.totalorder %s338, 35
      %s340 = scalar_select %p339, %s338, 35
      %s341 = smul.addr %s340, 8
      %s342 = scalar_lea.vmem %s1, %s341
      %s343 = smul.u32 4, %s24
      %s344 = smul.u32 4, %s24
      %p345 = scmp.lt.s32.totalorder %s344, 35
      %s346 = scalar_select %p345, %s344, 35
      %s347 = smul.addr %s346, 8
      %s348 = scalar_lea.vmem %s2, %s347
      %s349 = smul.u32 4, %s24
      %s350 = sld [smem:[#allocation3 + %s24]]
      %p351 = scmp.lt.s32.totalorder %s350, 7
      %s352 = scalar_select %p351, %s350, 7
      %s353 = smul.addr %s352, 4
      %s354 = smul.addr %s353, 4
      %s355 = scalar_lea.vmem %s3, %s354
      %s356 = sld [smem:[#allocation3 + %s24]]
      %s357 = sld [smem:[#allocation3 + %s24]]
      %p358 = scmp.lt.s32.totalorder %s357, 7
      %s359 = scalar_select %p358, %s357, 7
      %s360 = scalar_lea.vmem %s4, %s359
      %s361 = sld [smem:[#allocation3 + %s24]]
      %s362 = sld [smem:[#allocation3 + %s24]]
      %p363 = scmp.lt.s32.totalorder %s362, 7
      %s364 = scalar_select %p363, %s362, 7
      %s365 = smul.addr %s364, 16
      %s366 = smul.addr %s365, 4
      %s367 = scalar_lea.vmem %s5, %s366
      %s368 = sld [smem:[#allocation3 + %s24]]
      %s369 = sld [smem:[#allocation3 + %s24]]
      %p370 = scmp.lt.s32.totalorder %s369, 7
      %s371 = scalar_select %p370, %s369, 7
      %s372 = scalar_lea.vmem %s6, %s371
      %s373 = sld [smem:[#allocation3 + %s24]]
      %s374 = smul.u32 4, %s24
      %p375 = scmp.lt.s32.totalorder %s374, 35
      %s376 = scalar_select %p375, %s374, 35
      %s377 = smul.addr %s376, 8
      %s378 = scalar_lea.vmem %s7, %s377
      %s379 = smul.u32 4, %s24
      %v381 = vld [vmem:[%s342] sm:$0xff]
      %v382 = vld [vmem:[%s342 + $0x8] sm:$0xff]
      %v383 = vld [vmem:[%s342 + $0x10] sm:$0xff]
      %v384 = vld [vmem:[%s342 + $0x18] sm:$0xff]
      %v385 = vpack.c.bf16 %v382, %v381
      %v386 = vpack.c.bf16 %v384, %v383
      %v387 = vld [vmem:[%s355] sm:$0xf]
      %v388 = vld [vmem:[%s355 + $0x4] sm:$0xf]
      %v389 = vld [vmem:[%s355 + $0x8] sm:$0xf]
      %v390 = vld [vmem:[%s355 + $0xc] sm:$0xf]
      %v391 = vld [vmem:[%s360] sm:$0x1]
      %v393 = vlaneseq
      %v394 = vshrl.u32 %v393, 7
      %v395 = vsub.s32 0, %v394
      %v396 = vrot.slane %v391, %v395
      %v402 = vunpack.c.l.b16 %v387
      %v403 = vunpack.c.l.b16 %v388
      %v404 = vunpack.c.l.b16 %v389
      %v405 = vunpack.c.l.b16 %v390
      %v406 = vpack.c.b16 %v403, %v402
      %v407 = vpack.c.b16 %v405, %v404
      %vm410 = vcmask 261120
      %v412 = vsel %vm410, %v385, 0
      %v415 = vsel %vm410, %v386, 0
      %417 = vmatprep.subr.bf16.mxu0 0
      %418 = vmatpush1.bf16.msra.mxu0 %v406
      %419 = vmatprep.subr.bf16.mxu0 0
      %420 = vmatpush1.bf16.msra.mxu0 %v407
      %421 = vmatprep.subr.bf16.mxu0 0
      %422 = vmatpush1.bf16.msra.mxu0 0
      %423 = vmatprep.subr.bf16.mxu0 0
      %424 = vmatpush1.bf16.msra.mxu0 0
      %425 = vmatprep.subr.bf16.mxu0 0
      %426 = vmatpush1.bf16.msra.mxu0 0
      %427 = vmatprep.subr.bf16.mxu0 0
      %428 = vmatpush1.bf16.msra.mxu0 0
      %429 = vmatprep.subr.bf16.mxu0 0
      %430 = vmatpush1.bf16.msra.mxu0 0
      %431 = vmatprep.subr.bf16.mxu0 0
      %432 = vmatpush1.bf16.msra.mxu0 0
      %433 = vmatprep.subr.bf16.mxu0 0
      %434 = vmatpush1.bf16.msra.mxu0 0
      %435 = vmatprep.subr.bf16.mxu0 0
      %436 = vmatpush1.bf16.msra.mxu0 0
      %437 = vmatprep.subr.bf16.mxu0 0
      %438 = vmatpush1.bf16.msra.mxu0 0
      %439 = vmatprep.subr.bf16.mxu0 0
      %440 = vmatpush1.bf16.msra.mxu0 0
      %441 = vmatprep.subr.bf16.mxu0 0
      %442 = vmatpush1.bf16.msra.mxu0 0
      %443 = vmatprep.subr.bf16.mxu0 0
      %444 = vmatpush1.bf16.msra.mxu0 0
      %445 = vmatprep.subr.bf16.mxu0 0
      %446 = vmatpush1.bf16.msra.mxu0 0
      %447 = vmatprep.subr.bf16.mxu0 0
      %448 = vmatpush1.bf16.msra.mxu0 0
      %449 = vmatprep.mubr.bf16.mxu0 0
      %450 = vmatmul.mubr.bf16.gmra.mrb[0].mxu0 %v412
      %v451 = vpop.f32.mrb[0].mxu0
      %v452 = vadd.f32 %v396, %v451
      %v453 = vpop.f32.mrb[0].mxu0
      %v454 = vpop.f32.mrb[0].mxu0
      %v455 = vadd.f32 %v396, %v454
      %v456 = vpop.f32.mrb[0].mxu0
      %457 = vmatprep.mubr.bf16.mxu0 0
      %458 = vmatmul.mubr.bf16.gmra.mrb[0].mxu0 %v415
      %v459 = vpop.f32.mrb[0].mxu0
      %v460 = vadd.f32 %v396, %v459
      %v461 = vpop.f32.mrb[0].mxu0
      %v462 = vpop.f32.mrb[0].mxu0
      %v463 = vadd.f32 %v396, %v462
      %v464 = vpop.f32.mrb[0].mxu0
      %465 = vdwg.mxu0
      %v466 = vmax.f32 %v452, 0.0
      %v467 = vmax.f32 %v455, 0.0
      %v468 = vmax.f32 %v460, 0.0
      %v469 = vmax.f32 %v463, 0.0
      %v470 = vpack.c.bf16 %v467, %v466
      %v471 = vpack.c.bf16 %v469, %v468
      %v472 = vld [vmem:[%s367] sm:$0xf]
      %v473 = vld [vmem:[%s367 + $0x4] sm:$0xf]
      %v474 = vld [vmem:[%s367 + $0x8] sm:$0xf]
      %v475 = vld [vmem:[%s367 + $0xc] sm:$0xf]
      %v476 = vld [vmem:[%s367 + $0x10] sm:$0xf]
      %v477 = vld [vmem:[%s367 + $0x14] sm:$0xf]
      %v478 = vld [vmem:[%s367 + $0x18] sm:$0xf]
      %v479 = vld [vmem:[%s367 + $0x1c] sm:$0xf]
      %v480 = vld [vmem:[%s367 + $0x20] sm:$0xf]
      %v481 = vld [vmem:[%s367 + $0x24] sm:$0xf]
      %v482 = vld [vmem:[%s367 + $0x28] sm:$0xf]
      %v483 = vld [vmem:[%s367 + $0x2c] sm:$0xf]
      %v484 = vld [vmem:[%s367 + $0x30] sm:$0xf]
      %v485 = vld [vmem:[%s367 + $0x34] sm:$0xf]
      %v486 = vld [vmem:[%s367 + $0x38] sm:$0xf]
      %v487 = vld [vmem:[%s367 + $0x3c] sm:$0xf]
      %v488 = vld [vmem:[%s372] sm:$0x1]
      %v490 = vlaneseq
      %v491 = vshrl.u32 %v490, 7
      %v492 = vsub.s32 0, %v491
      %v493 = vrot.slane %v488, %v492
      %v511 = vunpack.c.l.b16 %v472
      %v512 = vunpack.c.l.b16 %v473
      %v513 = vunpack.c.l.b16 %v474
      %v514 = vunpack.c.l.b16 %v475
      %v515 = vunpack.c.l.b16 %v476
      %v516 = vunpack.c.l.b16 %v477
      %v517 = vunpack.c.l.b16 %v478
      %v518 = vunpack.c.l.b16 %v479
      %v519 = vunpack.c.l.b16 %v480
      %v520 = vunpack.c.l.b16 %v481
      %v521 = vunpack.c.l.b16 %v482
      %v522 = vunpack.c.l.b16 %v483
      %v523 = vunpack.c.l.b16 %v484
      %v524 = vunpack.c.l.b16 %v485
      %v525 = vunpack.c.l.b16 %v486
      %v526 = vunpack.c.l.b16 %v487
      %v527 = vpack.c.b16 %v512, %v511
      %v528 = vpack.c.b16 %v514, %v513
      %v529 = vpack.c.b16 %v516, %v515
      %v530 = vpack.c.b16 %v518, %v517
      %v531 = vpack.c.b16 %v520, %v519
      %v532 = vpack.c.b16 %v522, %v521
      %v533 = vpack.c.b16 %v524, %v523
      %v534 = vpack.c.b16 %v526, %v525
      %543 = vmatprep.subr.bf16.mxu0 0
      %544 = vmatpush1.bf16.msra.mxu0 %v527
      %545 = vmatprep.subr.bf16.mxu0 0
      %546 = vmatpush1.bf16.msra.mxu0 %v528
      %547 = vmatprep.subr.bf16.mxu0 0
      %548 = vmatpush1.bf16.msra.mxu0 %v529
      %549 = vmatprep.subr.bf16.mxu0 0
      %550 = vmatpush1.bf16.msra.mxu0 %v530
      %551 = vmatprep.subr.bf16.mxu0 0
      %552 = vmatpush1.bf16.msra.mxu0 %v531
      %553 = vmatprep.subr.bf16.mxu0 0
      %554 = vmatpush1.bf16.msra.mxu0 %v532
      %555 = vmatprep.subr.bf16.mxu0 0
      %556 = vmatpush1.bf16.msra.mxu0 %v533
      %557 = vmatprep.subr.bf16.mxu0 0
      %558 = vmatpush1.bf16.msra.mxu0 %v534
      %559 = vmatprep.subr.bf16.mxu0 0
      %560 = vmatpush1.bf16.msra.mxu0 0
      %561 = vmatprep.subr.bf16.mxu0 0
      %562 = vmatpush1.bf16.msra.mxu0 0
      %563 = vmatprep.subr.bf16.mxu0 0
      %564 = vmatpush1.bf16.msra.mxu0 0
      %565 = vmatprep.subr.bf16.mxu0 0
      %566 = vmatpush1.bf16.msra.mxu0 0
      %567 = vmatprep.subr.bf16.mxu0 0
      %568 = vmatpush1.bf16.msra.mxu0 0
      %569 = vmatprep.subr.bf16.mxu0 0
      %570 = vmatpush1.bf16.msra.mxu0 0
      %571 = vmatprep.subr.bf16.mxu0 0
      %572 = vmatpush1.bf16.msra.mxu0 0
      %573 = vmatprep.subr.bf16.mxu0 0
      %574 = vmatpush1.bf16.msra.mxu0 0
      %575 = vmatprep.mubr.bf16.mxu0 0
      %576 = vmatmul.mubr.bf16.gmra.mrb[0].mxu0 %v470
      %v577 = vpop.f32.mrb[0].mxu0
      %v578 = vadd.f32 %v493, %v577
      %v579 = vpop.f32.mrb[0].mxu0
      %v580 = vpop.f32.mrb[0].mxu0
      %v581 = vadd.f32 %v493, %v580
      %v582 = vpop.f32.mrb[0].mxu0
      %583 = vmatprep.mubr.bf16.mxu0 0
      %584 = vmatmul.mubr.bf16.gmra.mrb[0].mxu0 %v471
      %v585 = vpop.f32.mrb[0].mxu0
      %v586 = vadd.f32 %v493, %v585
      %v587 = vpop.f32.mrb[0].mxu0
      %v588 = vpop.f32.mrb[0].mxu0
      %v589 = vadd.f32 %v493, %v588
      %v590 = vpop.f32.mrb[0].mxu0
      %591 = vdwg.mxu0
      %v592 = vld [vmem:[%s348] sm:$0xff]
      %v593 = vld [vmem:[%s348 + $0x8] sm:$0xff]
      %v594 = vld [vmem:[%s348 + $0x10] sm:$0xff]
      %v595 = vld [vmem:[%s348 + $0x18] sm:$0xff]
      %597 = vset.pattern.permute.xlu0 0
      %598 = vperm.xlu0 %597, %v592
      %v599 = vpop.permute.xlu0 %598
      %602 = vset.pattern.permute.xlu0 0
      %603 = vperm.xlu0 %602, %v593
      %v604 = vpop.permute.xlu0 %603
      %607 = vset.pattern.permute.xlu0 0
      %608 = vperm.xlu0 %607, %v594
      %v609 = vpop.permute.xlu0 %608
      %612 = vset.pattern.permute.xlu0 0
      %613 = vperm.xlu0 %612, %v595
      %v614 = vpop.permute.xlu0 %613
      %v616 = vmul.f32 %v599, %v578
      %v617 = vmul.f32 %v604, %v581
      %v618 = vmul.f32 %v609, %v586
      %v619 = vmul.f32 %v614, %v589
      %620 = vst.msk [vmem:[%s378] sm:$0xff] %vm410, %v616
      %621 = vst.msk [vmem:[%s378 + $0x8] sm:$0xff] %vm410, %v617
      %622 = vst.msk [vmem:[%s378 + $0x10] sm:$0xff] %vm410, %v618
      %623 = vst.msk [vmem:[%s378 + $0x18] sm:$0xff] %vm410, %v619
      %s624 = smul.u32 4, %s24
      %p625 = scmp.lt.s32.totalorder %s624, 35
      %s626 = scalar_select %p625, %s624, 35
      %s627 = smul.addr %s626, 8
      %s628 = scalar_lea.vmem %s7, %s627
      // Predicated region
      $region45: #{sparse_moe.3} parent=43 // pred_check
        %p629 = pneg %p206
      $region46: #{sparse_moe.3} parent=43 // pred_check_branch
        %631 = sbr.rel (%p629) target = $region48
      $region47: #{sparse_moe.3} parent=43 // pred_region
        %s632 = smul.u32 4, %s24
      $region48: #{sparse_moe.3} parent=43 // pred_fallthru
        _
    $region44: #{sparse_moe.3} parent=5 // pred_fallthru
      _
    %p633 = scmp.le.s32.totalorder 2, %s19
    // Predicated region
    $region49: #{sparse_moe.3} parent=5 // pred_check
      %p634 = pneg %p633
    $region50: #{sparse_moe.3} parent=5 // pred_check_branch
      %636 = sbr.rel (%p634) target = $region52
    $region51: #{sparse_moe.3} parent=5 // pred_region
      %s637 = ssub.s32 %s19, 2
      // Predicated region
      $region53: #{sparse_moe.3} parent=51 // pred_check
        %p638 = pneg %p212
      $region54: #{sparse_moe.3} parent=51 // pred_check_branch
        %640 = sbr.rel (%p638) target = $region56
      $region55: #{sparse_moe.3} parent=51 // pred_region
        %s641 = smul.u32 4, %s25
        %p642 = scmp.lt.s32.totalorder %s641, 35
        %s643 = scalar_select %p642, %s641, 35
        %s644 = smul.addr %s643, 8
        %s645 = scalar_lea.vmem %s7, %s644
      $region56: #{sparse_moe.3} parent=51 // pred_fallthru
        _
    $region52: #{sparse_moe.3} parent=5 // pred_fallthru
      _
  $region6: #{sparse_moe.3} parent=0 // loop_footer
    %s23 = sadd.s32 1, %s19
  $region7: #{sparse_moe.3} parent=0 // loop_footer_branch
    %18 = sbr.rel target = $region3
  $region8: #{sparse_moe.3} parent=0 // loop_exit
    _

</llo_original>
